<compile_context>
chip_gen: v7x
topology: tpu7x:2x2x1
jax: 0.10.0
libtpu: 0.0.40
codegen_flags: <defaults>
</compile_context>

<pallas_src>
import functools

import jax
import jax.numpy as jnp
from jax.experimental import pallas as pl
from jax.experimental.pallas import tpu as pltpu

BN_EPS = 1e-5  # PyTorch BatchNorm2d default eps
_VMEM_LIMIT = 32 * 1024 * 1024  # safe on v5e/v6e/v7x, plenty of headroom


def _stats_kernel(x_ref, mean_ref, m2_ref, *, tile_cols):
    """Pass 1: running per-feature mean / M2 over all pixels.

    x_ref:   [F, tile] f32 tile of the feature-major slab.
    mean_ref, m2_ref: [F, 1] f32 accumulators, resident across the grid
    (output block index is constant -> written back to HBM once at the end).
    Per-tile stats are exact two-pass; tiles are merged with the Chan/Welford
    formula, so there is no E[x^2]-mean^2 catastrophic cancellation.
    """
    i = pl.program_id(0)

    @pl.when(i == 0)
    def _():
        mean_ref[...] = jnp.zeros_like(mean_ref)
        m2_ref[...] = jnp.zeros_like(m2_ref)

    x = x_ref[...]                                              # [F, tile]
    nb = float(tile_cols)
    tmean = jnp.sum(x, axis=1, keepdims=True) * (1.0 / nb)      # [F, 1]
    d = x - tmean
    tm2 = jnp.sum(d * d, axis=1, keepdims=True)                 # [F, 1]

    # Chan merge: (na, mean_a, M2_a) + (nb, mean_b, M2_b)
    na = (i * tile_cols).astype(jnp.float32)
    n = na + nb
    delta = tmean - mean_ref[...]
    mean_ref[...] = mean_ref[...] + delta * (nb / n)
    m2_ref[...] = m2_ref[...] + tm2 + (delta * delta) * (na * (nb / n))


def _norm_kernel(x_ref, scale_ref, shift_ref, space_ref, time_ref, *, c):
    """Pass 2: affine-normalize and compute the hyperbolic time component.

    x_ref: [F, tile]; scale/shift: [F, 1] (gamma folded into scale).
    Outputs: space [F, tile] (sublane-aligned) and time [1, tile] (lane-dense).
    """
    y = x_ref[...] * scale_ref[...] + shift_ref[...]            # [F, tile]
    space_ref[...] = y
    t2 = jnp.sum(y * y, axis=0, keepdims=True) + c              # [1, tile]
    time_ref[...] = jnp.sqrt(jnp.maximum(t2, 1e-6))


def _pick_tile(n_cols, feat, target_bytes=2 * 1024 * 1024):
    """Largest column tile that divides n_cols, is a multiple of 128 (or equals
    n_cols), and keeps one [F, tile] f32 buffer around `target_bytes`."""
    target_cols = max(128, (target_bytes // (4 * feat)) // 128 * 128)
    if n_cols <= target_cols:
        return n_cols
    if n_cols % 128 != 0:
        # Rare ragged case: fall back to a single legal full-width block.
        return n_cols
    t = target_cols
    while t >= 128:
        if n_cols % t == 0:
            return t
        t -= 128
    return n_cols


def hyp_layer(x, gamma, beta, c=1.0, tile_cols=None):
    """x: [B, H, W, F+1] f32 -> [B, W, H, F+1] f32 (matches the PyTorch module)."""
    B, H, W, Fp1 = x.shape
    F = Fp1 - 1
    N = B * H * W

    # Channel-drop + feature-major layout: the slice fuses into this single
    # XLA transpose copy (one HBM pass, no separately materialized x[..., 1:]).
    xs_fm = jnp.transpose(x[..., 1:], (3, 0, 1, 2)).reshape(F, N)

    tile = tile_cols if tile_cols is not None else _pick_tile(N, F)
    assert N % tile == 0, (N, tile)
    num_tiles = N // tile

    # ---- Pass 1: per-feature batch statistics (sequential accumulation). ----
    mean, m2 = pl.pallas_call(
        functools.partial(_stats_kernel, tile_cols=tile),
        out_shape=(jax.ShapeDtypeStruct((F, 1), jnp.float32),
                   jax.ShapeDtypeStruct((F, 1), jnp.float32)),
        grid=(num_tiles,),
        in_specs=[pl.BlockSpec((F, tile), lambda j: (0, j))],
        out_specs=(pl.BlockSpec((F, 1), lambda j: (0, 0)),
                   pl.BlockSpec((F, 1), lambda j: (0, 0))),
        compiler_params=pltpu.CompilerParams(
            dimension_semantics=("arbitrary",),
            vmem_limit_bytes=_VMEM_LIMIT),
    )(xs_fm)

    # Tiny [F]-sized epilogue in XLA: biased variance, fold gamma into scale.
    var = m2 / N
    inv = 1.0 / jnp.sqrt(var + BN_EPS)
    scale = gamma.reshape(F, 1).astype(jnp.float32) * inv
    shift = beta.reshape(F, 1).astype(jnp.float32) - mean * scale

    # ---- Pass 2: normalize + time component (parallel across cores). ----
    space_fm, time_fm = pl.pallas_call(
        functools.partial(_norm_kernel, c=float(c)),
        out_shape=(jax.ShapeDtypeStruct((F, N), jnp.float32),
                   jax.ShapeDtypeStruct((1, N), jnp.float32)),
        grid=(num_tiles,),
        in_specs=[pl.BlockSpec((F, tile), lambda j: (0, j)),
                  pl.BlockSpec((F, 1), lambda j: (0, 0)),
                  pl.BlockSpec((F, 1), lambda j: (0, 0))],
        out_specs=(pl.BlockSpec((F, tile), lambda j: (0, j)),
                   pl.BlockSpec((1, tile), lambda j: (0, j))),
        compiler_params=pltpu.CompilerParams(
            dimension_semantics=("parallel",),
            vmem_limit_bytes=_VMEM_LIMIT),
    )(xs_fm, scale, shift)

    # [1,N] + [F,N] -> [B, W, H, F+1]; concat + reshape + transpose fuse into
    # one XLA copy (the H<->W swap comes from the module's permute round trip).
    out_fm = jnp.concatenate([time_fm, space_fm], axis=0)       # [F+1, N]
    return out_fm.reshape(F + 1, B, H, W).transpose(1, 3, 2, 0)


def ref_hyp_layer(x, gamma, beta, c=1.0):
    """Pure-JAX reference mirroring the PyTorch forward (BatchNorm branch)."""
    xs = x[..., 1:]
    mean = xs.mean(axis=(0, 1, 2), keepdims=True)
    var = ((xs - mean) ** 2).mean(axis=(0, 1, 2), keepdims=True)
    y = (xs - mean) / jnp.sqrt(var + BN_EPS) * gamma + beta
    y = jnp.transpose(y, (0, 2, 1, 3))  # H<->W swap
    t = jnp.sqrt(jnp.maximum((y ** 2).sum(-1, keepdims=True) + c, 1e-6))
    return jnp.concatenate([t, y], axis=-1)


if __name__ == "__main__":
    # Small shapes consistent with the module: batch=2, spatial=16x16, features=4.
    B, H, W, FEAT = 2, 16, 16, 4
    C_CURV = 1.0

    key = jax.random.PRNGKey(0)
    x = jax.random.normal(key, (B, H, W, FEAT + 1), dtype=jnp.float32) * 1.3 + 0.4
    # Deterministic, non-trivial BatchNorm2d affine params.
    gamma = 1.0 + 0.1 * jnp.arange(FEAT, dtype=jnp.float32)
    beta = 0.05 * jnp.arange(FEAT, dtype=jnp.float32)

    ref = ref_hyp_layer(x, gamma, beta, c=C_CURV)

    # Default tiling (single tile at this small size).
    out = jax.block_until_ready(hyp_layer(x, gamma, beta, c=C_CURV))
    assert out.shape == (B, W, H, FEAT + 1), out.shape
    assert jnp.allclose(out, ref, atol=1e-5, rtol=1e-5), float(jnp.abs(out - ref).max())

    # Force the multi-tile path (exercises the Chan-merge accumulation and the
    # parallel normalize grid): 512 pixels / 128-column tiles = 4 grid steps.
    out_tiled = jax.block_until_ready(hyp_layer(x, gamma, beta, c=C_CURV, tile_cols=128))
    assert jnp.allclose(out_tiled, ref, atol=1e-5, rtol=1e-5), \
        float(jnp.abs(out_tiled - ref).max())

    print("KERNEL_OK")
</pallas_src>

<mosaic_0001>
module attributes {stable_mosaic.version = 11 : i64} {
  func.func @_stats_kernel(%arg0: i32, %arg1: memref<4x512xf32, #tpu.memory_space<vmem>>, %arg2: memref<4x1xf32, #tpu.memory_space<vmem>>, %arg3: memref<4x1xf32, #tpu.memory_space<vmem>>) attributes {dimension_semantics = [#tpu.dimension_semantics<arbitrary>], iteration_bounds = array<i64: 1>, scalar_prefetch = 0 : i64, scratch_operands = 0 : i64, tpu.core_type = #tpu.core_type<tc>, window_params = [{transform_indices = @transform_0, window_bounds = array<i64: 4, 512>}, {pipeline_mode = #tpu.pipeline_mode<synchronous>, transform_indices = @transform_1, window_bounds = array<i64: 4, 1>}, {pipeline_mode = #tpu.pipeline_mode<synchronous>, transform_indices = @transform_2, window_bounds = array<i64: 4, 1>}]} {
    %c0_i32 = arith.constant 0 : i32
    %0 = arith.cmpi eq, %arg0, %c0_i32 : i32
    %1 = arith.extui %0 : i1 to i32
    %c0_i32_0 = arith.constant 0 : i32
    %2 = arith.cmpi ne, %1, %c0_i32_0 : i32
    scf.if %2 {
      %cst_17 = arith.constant 0.000000e+00 : f32
      %33 = vector.broadcast %cst_17 : f32 to vector<4x1xf32>
      %c0_18 = arith.constant 0 : index
      %c0_19 = arith.constant 0 : index
      %34 = vector.load %arg2[%c0_18, %c0_19] : memref<4x1xf32, #tpu.memory_space<vmem>>, vector<4x1xf32>
      tpu.vector_store %arg2[%c0_18, %c0_19], %33 {strides = array<i32>} : memref<4x1xf32, #tpu.memory_space<vmem>>, vector<4x1xf32>,
      %cst_20 = arith.constant 0.000000e+00 : f32
      %35 = vector.broadcast %cst_20 : f32 to vector<4x1xf32>
      %c0_21 = arith.constant 0 : index
      %c0_22 = arith.constant 0 : index
      %36 = vector.load %arg3[%c0_21, %c0_22] : memref<4x1xf32, #tpu.memory_space<vmem>>, vector<4x1xf32>
      tpu.vector_store %arg3[%c0_21, %c0_22], %35 {strides = array<i32>} : memref<4x1xf32, #tpu.memory_space<vmem>>, vector<4x1xf32>,
    } else {
    }
    %c0 = arith.constant 0 : index
    %c0_1 = arith.constant 0 : index
    %3 = vector.load %arg1[%c0, %c0_1] : memref<4x512xf32, #tpu.memory_space<vmem>>, vector<4x512xf32>
    %cst = arith.constant dense<0.000000e+00> : vector<4xf32>
    %4 = vector.multi_reduction <add>, %3, %cst [1] : vector<4x512xf32> to vector<4xf32>
    %5 = vector.shape_cast %4 : vector<4xf32> to vector<4x1xf32>
    %cst_2 = arith.constant 0.001953125 : f32
    %6 = vector.broadcast %cst_2 : f32 to vector<4x1xf32>
    %7 = arith.mulf %5, %6 : vector<4x1xf32>
    %8 = vector.broadcast %7 : vector<4x1xf32> to vector<4x512xf32>
    %9 = arith.subf %3, %8 : vector<4x512xf32>
    %10 = arith.mulf %9, %9 : vector<4x512xf32>
    %cst_3 = arith.constant dense<0.000000e+00> : vector<4xf32>
    %11 = vector.multi_reduction <add>, %10, %cst_3 [1] : vector<4x512xf32> to vector<4xf32>
    %12 = vector.shape_cast %11 : vector<4xf32> to vector<4x1xf32>
    %c512_i32 = arith.constant 512 : i32
    %13 = arith.muli %arg0, %c512_i32 : i32
    %14 = arith.sitofp %13 : i32 to f32
    %cst_4 = arith.constant 5.120000e+02 : f32
    %15 = arith.addf %14, %cst_4 : f32
    %c0_5 = arith.constant 0 : index
    %c0_6 = arith.constant 0 : index
    %16 = vector.load %arg2[%c0_5, %c0_6] : memref<4x1xf32, #tpu.memory_space<vmem>>, vector<4x1xf32>
    %17 = arith.subf %7, %16 : vector<4x1xf32>
    %c0_7 = arith.constant 0 : index
    %c0_8 = arith.constant 0 : index
    %18 = vector.load %arg2[%c0_7, %c0_8] : memref<4x1xf32, #tpu.memory_space<vmem>>, vector<4x1xf32>
    %cst_9 = arith.constant 5.120000e+02 : f32
    %19 = arith.divf %cst_9, %15 : f32
    %20 = vector.broadcast %19 : f32 to vector<4x1xf32>
    %21 = arith.mulf %17, %20 : vector<4x1xf32>
    %22 = arith.addf %18, %21 : vector<4x1xf32>
    %c0_10 = arith.constant 0 : index
    %c0_11 = arith.constant 0 : index
    %23 = vector.load %arg2[%c0_10, %c0_11] : memref<4x1xf32, #tpu.memory_space<vmem>>, vector<4x1xf32>
    tpu.vector_store %arg2[%c0_10, %c0_11], %22 {strides = array<i32>} : memref<4x1xf32, #tpu.memory_space<vmem>>, vector<4x1xf32>,
    %c0_12 = arith.constant 0 : index
    %c0_13 = arith.constant 0 : index
    %24 = vector.load %arg3[%c0_12, %c0_13] : memref<4x1xf32, #tpu.memory_space<vmem>>, vector<4x1xf32>
    %25 = arith.addf %24, %12 : vector<4x1xf32>
    %26 = arith.mulf %17, %17 : vector<4x1xf32>
    %cst_14 = arith.constant 5.120000e+02 : f32
    %27 = arith.divf %cst_14, %15 : f32
    %28 = arith.mulf %14, %27 : f32
    %29 = vector.broadcast %28 : f32 to vector<4x1xf32>
    %30 = arith.mulf %26, %29 : vector<4x1xf32>
    %31 = arith.addf %25, %30 : vector<4x1xf32>
    %c0_15 = arith.constant 0 : index
    %c0_16 = arith.constant 0 : index
    %32 = vector.load %arg3[%c0_15, %c0_16] : memref<4x1xf32, #tpu.memory_space<vmem>>, vector<4x1xf32>
    tpu.vector_store %arg3[%c0_15, %c0_16], %31 {strides = array<i32>} : memref<4x1xf32, #tpu.memory_space<vmem>>, vector<4x1xf32>,
    return
  }
  func.func @transform_0(%arg0: i32) -> (i32, i32) {
    %c0_i32 = arith.constant 0 : i32
    %c0_i32_0 = arith.constant 0 : i32
    return %c0_i32, %arg0 : i32, i32
  }
  func.func @transform_1(%arg0: i32) -> (i32, i32) {
    %c0_i32 = arith.constant 0 : i32
    %c0_i32_0 = arith.constant 0 : i32
    %c0_i32_1 = arith.constant 0 : i32
    return %c0_i32, %c0_i32_0 : i32, i32
  }
  func.func @transform_2(%arg0: i32) -> (i32, i32) {
    %c0_i32 = arith.constant 0 : i32
    %c0_i32_0 = arith.constant 0 : i32
    %c0_i32_1 = arith.constant 0 : i32
    return %c0_i32, %c0_i32_0 : i32, i32
  }
}

</mosaic_0001>

<llo_original>
// kernel: tpu_custom_call.1
$region0: #{tpu_custom_call.1}
  #allocation0 [shape = 'u32[]', space=smem, size = 0x4, offset = 0x4, fixed_abs, tag = 'smem constant byte address 0x4 - core index']
  #allocation1 [shape = 'u32[144,128]{1,0:T(1,128)}', space=vmem, size = 0x12000, scoped, tag = 'internal scratch']
  %s0 = inlined_call_operand.hbm [shape: f32[4,512], index: 0, kind: input, shape index: {}]
  %s1 = inlined_call_operand.vmem [shape: f32[4,1], index: 1, kind: output, shape index: {0}]
  %s2 = inlined_call_operand.vmem [shape: f32[4,1], index: 2, kind: output, shape index: {1}]
  %3 = xla_tuple %s1, %s2
  %s4 = sld [smem:[#allocation0]]
  $region30: #{tpu_custom_call.1} parent=0
    _
  %s6 = ssub.s32 1, %s4
  %s7 = scalar_select 0, %s6, %s4
  $region1: #{tpu_custom_call.1} parent=0
    #allocation2 [shape = 'u8[8192]{0}', space=vmem, size = 0x2000, scoped, tag = 'input window, operand 0, single buffered']
    #allocation3 [shape = 's32[1]{0}', space=sflag, size = 0x4, scoped, tag = 'scoped memory for tpu_custom_call.1']
    %8 = vsyncpa [#allocation3], 0
    // Predicated region
    $region2: #{tpu_custom_call.1} parent=1 // pred_check
      _
    $region3: #{tpu_custom_call.1} parent=1 // pred_check_branch
      %10 = sbr.rel (0) target = $region5
    $region4: #{tpu_custom_call.1} parent=1 // pred_region
      %s12 = ssub.s32 256, 256
      %13 = vsyncadd [#allocation3], %s12
      %s15 = sshll.u32 [#allocation2], 4
      %s16 = int_to_ptr.vmem [resolvable:$true] %s15
      %18 = dma.hbm_to_vmem [thread:$0]  %s0, 256, %s16, [#allocation3]
    $region5: #{tpu_custom_call.1} parent=1 // pred_fallthru
      _
    // Predicated region
    $region6: #{tpu_custom_call.1} parent=1 // pred_check
      _
    $region7: #{tpu_custom_call.1} parent=1 // pred_check_branch
      %20 = sbr.rel (0) target = $region9
    $region8: #{tpu_custom_call.1} parent=1 // pred_region
      %21 = dma.done [#allocation3], 256
    $region9: #{tpu_custom_call.1} parent=1 // pred_fallthru
      _
    %p22 = scmp.eq.s32.totalorder 0, 0
    // Predicated region
    $region10: #{tpu_custom_call.1} parent=1 // pred_check
      %p23 = pneg %p22
    $region11: #{tpu_custom_call.1} parent=1 // pred_check_branch
      %25 = sbr.rel (%p23) target = $region13
    $region12: #{tpu_custom_call.1} parent=1 // pred_region
      %vm26 = vcmask 3072
      %27 = vst.msk [vmem:[%s1] sm:$0xf] %vm26, 0.0
      %28 = vst.msk [vmem:[%s2] sm:$0xf] %vm26, 0.0
    $region13: #{tpu_custom_call.1} parent=1 // pred_fallthru
      _
    %v29 = vld [vmem:[#allocation2] sm:$0xff]
    %v30 = vld [vmem:[#allocation2 + $0x8] sm:$0xff]
    %v33 = vcombine.high %v29, %v29
    %v34 = vcombine.high %v30, %v30
    %vm37 = vcmask 1043456
    %v38 = vsel %vm37, %v29, 0.0
    %v39 = vsel %vm37, %v33, 0.0
    %v40 = vadd.f32 %v38, %v39
    %v41 = vsel %vm37, %v30, 0.0
    %v42 = vadd.f32 %v40, %v41
    %v43 = vsel %vm37, %v34, 0.0
    %v44 = vadd.f32 %v42, %v43
    %45 = vadd.xlane.f32.xlu0 %v44
    %v46 = vpop.xlane.xlu0 %45
    %v47 = vmul.f32 %v46, 0.001953125
    %v50 = vunpack.c.l.s4 839922192
    %v51 = vunpack.c.0.s8 %v50
    %v52 = vlaneseq
    %v53 = vshrl.u32 %v52, 7
    %v54 = vsub.s32 %v51, %v53
    %v55 = vrot.slane %v47, %v54
    %v57 = vsub.f32 %v29, %v55
    %v58 = vsub.f32 %v30, %v55
    %v59 = vmul.f32 %v57, %v57
    %v60 = vmul.f32 %v58, %v58
    %v63 = vcombine.high %v59, %v59
    %v64 = vcombine.high %v60, %v60
    %v67 = vsel %vm37, %v59, 0.0
    %v68 = vsel %vm37, %v63, 0.0
    %v69 = vadd.f32 %v67, %v68
    %v70 = vsel %vm37, %v60, 0.0
    %v71 = vadd.f32 %v69, %v70
    %v72 = vsel %vm37, %v64, 0.0
    %v73 = vadd.f32 %v71, %v72
    %74 = vadd.xlane.f32.xlu0 %v73
    %v75 = vpop.xlane.xlu0 %74
    %s76 = smul.u32 0, 512
    %s77 = scvt.s32.f32 %s76
    %s78 = sadd.f32 %s77, 512.0
    %v79 = vld [vmem:[%s1] sm:$0xf]
    %v80 = vsub.f32 %v47, %v79
    %v81 = vstv %s78
    %v82 = vrcp.pop %v81
    %s83 = vtos %v82
    %s84 = smul.f32 512.0, %s83
    %v85 = vstv %s84
    %v86 = vmul.f32 %v80, %v85
    %v87 = vadd.f32 %v79, %v86
    %vm88 = vcmask 3072
    %89 = vst.msk [vmem:[%s1] sm:$0xf] %vm88, %v87
    %v90 = vld [vmem:[%s2] sm:$0xf]
    %v91 = vadd.f32 %v90, %v75
    %v92 = vmul.f32 %v80, %v80
    %s93 = smul.f32 %s77, %s84
    %v94 = vstv %s93
    %v95 = vmul.f32 %v92, %v94
    %v96 = vadd.f32 %v91, %v95
    %97 = vst.msk [vmem:[%s2] sm:$0xf] %vm88, %v96
    // Predicated region
    $region14: #{tpu_custom_call.1} parent=1 // pred_check
      _
    $region15: #{tpu_custom_call.1} parent=1 // pred_check_branch
      %99 = sbr.rel (0) target = $region17
    $region16: #{tpu_custom_call.1} parent=1 // pred_region
      _
    $region17: #{tpu_custom_call.1} parent=1 // pred_fallthru
      _
    // Predicated region
    $region18: #{tpu_custom_call.1} parent=1 // pred_check
      _
    $region19: #{tpu_custom_call.1} parent=1 // pred_check_branch
      %101 = sbr.rel (0) target = $region21
    $region20: #{tpu_custom_call.1} parent=1 // pred_region
      _
    $region21: #{tpu_custom_call.1} parent=1 // pred_fallthru
      _
    // Predicated region
    $region22: #{tpu_custom_call.1} parent=1 // pred_check
      _
    $region23: #{tpu_custom_call.1} parent=1 // pred_check_branch
      %103 = sbr.rel (0) target = $region25
    $region24: #{tpu_custom_call.1} parent=1 // pred_region
      _
    $region25: #{tpu_custom_call.1} parent=1 // pred_fallthru
      _
    // Predicated region
    $region26: #{tpu_custom_call.1} parent=1 // pred_check
      _
    $region27: #{tpu_custom_call.1} parent=1 // pred_check_branch
      %105 = sbr.rel (0) target = $region29
    $region28: #{tpu_custom_call.1} parent=1 // pred_region
      _
    $region29: #{tpu_custom_call.1} parent=1 // pred_fallthru
      _
    %106 = vsyncpa [#allocation3], 1

</llo_original>
